<compile_context>
chip_gen: v7x
topology: tpu7x:2x2x1
jax: 0.10.0
libtpu: 0.0.40
codegen_flags: <defaults>
</compile_context>

<pallas_src>
import jax
import jax.numpy as jnp
from jax import lax
from jax.experimental import pallas as pl
from jax.experimental.pallas import tpu as pltpu


def _round_up(x, k):
    return ((x + k - 1) // k) * k


def _vmem_capacity_bytes():
    try:
        info = pltpu.get_tpu_info()
        cap = getattr(info, "vmem_capacity_bytes", None)
        if cap:
            return int(cap)
    except Exception:
        pass
    return 64 * 1024 * 1024  # conservative default (v7x per-TC VMEM)


def _pick_tiles(n, m, d, emb_itemsize, gt_itemsize):
    """Pick (tn, tm) and a vmem limit.

    tn is a multiple of 8, tm a multiple of 128.  tn is additionally capped so
    the subject ("parallel") grid axis has >= 2 tiles whenever N permits (v7x
    megacore).  The budget includes double-buffered streams, the per-subject
    scratches, and an allowance for the implicit f32 dot result + elementwise
    temporaries (matters on v7x's 64 MiB VMEM).
    """
    cap = _vmem_capacity_bytes()
    budget = (cap * 2) // 5   # leave headroom for compiler-internal temporaries

    n8 = _round_up(max(n, 1), 8)
    m128 = _round_up(max(m, 1), 128)

    # >= 2 subject tiles whenever possible: i is the only "parallel" axis and
    # v7x has 2 TensorCores per chip.
    tn_max = _round_up((n8 + 1) // 2, 8) if n8 >= 16 else n8

    def usage(tn_, tm_):
        return (2 * tn_ * tm_ * gt_itemsize       # gt tile, double-buffered
                + 2 * tn_ * d * emb_itemsize      # subject tile, double-buffered
                + 2 * tm_ * d * emb_itemsize      # object tile, double-buffered
                + 2 * tm_ * 4                     # o_sq stream, double-buffered
                + 2 * 8 * tm_ * 4                 # (1,tm) output partials (sublane-padded)
                + tn_ * d * emb_itemsize          # sneg scratch
                + tn_ * 128 * 4                   # ssq scratch (lane-padded)
                + 3 * tn_ * tm_ * 4)              # f32 cross + err-chain temps

    tn_cands = [t for t in (1024, 512, 256, 128, 64, 32, 16, 8) if t <= tn_max]
    if tn_max not in tn_cands:
        tn_cands.append(tn_max)
    tm_cands = [t for t in (4096, 2048, 1024, 512, 256, 128) if t <= m128]
    if m128 <= 4096 and m128 not in tm_cands:
        tm_cands.append(m128)

    best = None
    for tn_ in tn_cands:
        for tm_ in tm_cands:
            if usage(tn_, tm_) <= budget:
                key = (tn_ * tm_, tm_)            # prefer area, then lane width
                if best is None or key > best[0]:
                    best = (key, tn_, tm_)
    if best is None:
        tn_, tm_ = 8, 128
    else:
        _, tn_, tm_ = best
    tn_ = min(tn_, n8)
    tm_ = min(tm_, m128)

    vmem_limit = int(min(cap * 3 // 4, max(48 << 20, 2 * usage(tn_, tm_))))
    return tn_, tm_, vmem_limit


def _make_kernel():
    def kernel(subj_ref, obj_ref, osq_ref, gt_ref, out_ref, ssq_ref, sneg_ref):
        # Cache ||s||^2 and -2*s once per subject tile; the subject block is
        # resident across the whole j sweep (its block index ignores j).
        @pl.when(pl.program_id(1) == 0)
        def _cache_subject():
            s32 = subj_ref[...].astype(jnp.float32)
            ssq_ref[...] = jnp.sum(s32 * s32, axis=1, keepdims=True)   # (tn, 1)
            sneg_ref[...] = (s32 * -2.0).astype(sneg_ref.dtype)        # (tn, d)

        # cross = -2 * S . O^T on the MXU: native-dtype inputs (bf16 stays
        # bf16), f32 accumulation, contraction over D of both operands (no
        # materialized transpose of the object tile).
        cross = lax.dot_general(
            sneg_ref[...], obj_ref[...],
            dimension_numbers=(((1,), (1,)), ((), ())),
            preferred_element_type=jnp.float32)                        # (tn, tm)

        # ||s||^2 + ||o||^2 - 2 s.o ; clamp (cancellation can dip below 0).
        sq_dist = jnp.maximum(ssq_ref[...] + osq_ref[...] + cross, 0.0)
        pred = jnp.sqrt(sq_dist)                                       # EUP
        err = pred - gt_ref[...].astype(jnp.float32)
        err2 = err * err

        # Per-step partial: reduce over the subject (sublane) axis only; the
        # tiny cross-lane finish happens outside the kernel.  Lane-dense
        # (1, tm) block per grid step -> no resident accumulator needed.
        out_ref[0] = jnp.sum(err2, axis=0, keepdims=True)              # (1, tm)

    return kernel


def knn_regression_loss(subject_embeddings, object_embeddings, ground_truth,
                        *, tile_n=None, tile_m=None):
    """Pallas-backed equivalent of KNNRegressionLoss.forward."""
    n, d = subject_embeddings.shape
    m, d2 = object_embeddings.shape
    assert d == d2, (d, d2)
    assert ground_truth.shape == (n, m), ground_truth.shape

    emb_itemsize = max(subject_embeddings.dtype.itemsize,
                       object_embeddings.dtype.itemsize)
    gt_itemsize = ground_truth.dtype.itemsize
    tn, tm, vmem_limit = _pick_tiles(n, m, d, emb_itemsize, gt_itemsize)
    if tile_n is not None:
        assert tile_n % 8 == 0
        tn = min(tile_n, _round_up(n, 8))
    if tile_m is not None:
        assert tile_m % 128 == 0
        tm = min(tile_m, _round_up(m, 128))

    n_pad = _round_up(n, tn)
    m_pad = _round_up(m, tm)
    num_i = n_pad // tn
    num_j = m_pad // tm

    f32 = jnp.float32
    s_sq = jnp.sum(subject_embeddings.astype(f32) ** 2, axis=1)   # (n,)
    o_sq = jnp.sum(object_embeddings.astype(f32) ** 2, axis=1)    # (m,)

    # Zero-pad embeddings; pad ground truth with the distances the kernel
    # predicts for padded rows/cols so padded entries contribute ~0 squared
    # error -> no in-kernel masking on any grid step.
    subj_p = subject_embeddings
    obj_p = object_embeddings
    gt_p = ground_truth
    if n_pad != n:
        subj_p = jnp.pad(subj_p, ((0, n_pad - n), (0, 0)))
    if m_pad != m:
        obj_p = jnp.pad(obj_p, ((0, m_pad - m), (0, 0)))
        right = jnp.broadcast_to(jnp.sqrt(s_sq)[:, None], (n, m_pad - m))
        gt_p = jnp.concatenate([gt_p, right.astype(gt_p.dtype)], axis=1)
    if n_pad != n:
        bot = jnp.broadcast_to(jnp.sqrt(o_sq)[None, :], (n_pad - n, m))
        if m_pad != m:
            bot = jnp.concatenate(
                [bot, jnp.zeros((n_pad - n, m_pad - m), f32)], axis=1)
        gt_p = jnp.concatenate([gt_p, bot.astype(gt_p.dtype)], axis=0)
    o_sq_p = jnp.pad(o_sq, (0, m_pad - m)).reshape(1, m_pad)      # (1, m_pad) f32

    grid_spec = pltpu.PrefetchScalarGridSpec(
        num_scalar_prefetch=0,
        grid=(num_i, num_j),
        in_specs=[
            pl.BlockSpec((tn, d), lambda i, j: (i, 0)),     # subjects (resident per i)
            pl.BlockSpec((tm, d), lambda i, j: (j, 0)),     # objects
            pl.BlockSpec((1, tm), lambda i, j: (0, j)),     # precomputed ||o||^2
            # Hot HBM stream.  (On v6e/v5e with 128 MiB VMEM this spec can also
            # take pipeline_mode=pl.Buffered(3); default kept for portability.)
            pl.BlockSpec((tn, tm), lambda i, j: (i, j)),    # ground truth
        ],
        out_specs=pl.BlockSpec((1, 1, tm), lambda i, j: (i, 0, j)),
        scratch_shapes=[
            pltpu.VMEM((tn, 1), jnp.float32),               # cached ||s||^2
            pltpu.VMEM((tn, d), subject_embeddings.dtype),  # cached -2*s (MXU LHS)
        ],
    )

    cost = pl.CostEstimate(
        flops=2 * n_pad * m_pad * d + 6 * n_pad * m_pad,
        transcendentals=n_pad * m_pad,                      # sqrt
        bytes_accessed=(gt_itemsize * n_pad * m_pad
                        + subject_embeddings.dtype.itemsize * n_pad * d
                        + object_embeddings.dtype.itemsize * m_pad * d * num_i
                        + 4 * m_pad * num_i                  # o_sq re-fetch
                        + 4 * num_i * m_pad),                # output partials
    )

    partials = pl.pallas_call(
        _make_kernel(),
        out_shape=jax.ShapeDtypeStruct((num_i, 1, m_pad), jnp.float32),
        grid_spec=grid_spec,
        compiler_params=pltpu.CompilerParams(
            dimension_semantics=("parallel", "arbitrary"),
            vmem_limit_bytes=vmem_limit,
        ),
        cost_estimate=cost,
    )(subj_p, obj_p, o_sq_p, gt_p)

    # Tiny finish outside the kernel: sum the lane-dense partials, divide by
    # the true N*M (padded entries contribute ~0 by construction).
    return jnp.sum(partials) / (n * m)


def knn_regression_loss_ref(subject_embeddings, object_embeddings, ground_truth):
    """Pure-JAX reference mirroring the PyTorch loop semantics."""
    diff = (subject_embeddings[:, None, :].astype(jnp.float32)
            - object_embeddings[None, :, :].astype(jnp.float32))
    pred = jnp.sqrt(jnp.sum(diff * diff, axis=-1))
    return jnp.mean((pred - ground_truth.astype(jnp.float32)) ** 2)


if __name__ == "__main__":
    key = jax.random.PRNGKey(0)
    k1, k2, k3, k4, k5, k6 = jax.random.split(key, 6)

    # Small shapes consistent with the module: N subjects, M objects, dim D.
    N, M, D = 16, 12, 32
    subj = jax.random.normal(k1, (N, D), dtype=jnp.float32)
    obj = jax.random.normal(k2, (M, D), dtype=jnp.float32)
    gt = jax.random.normal(k3, (N, M), dtype=jnp.float32)

    loss = knn_regression_loss(subj, obj, gt)
    jax.block_until_ready(loss)
    ref = knn_regression_loss_ref(subj, obj, gt)
    # Expanded-form distance (||s||^2+||o||^2-2 s.o) vs direct difference:
    # tolerances are loose-ish by design, this is a loss value.
    assert jnp.allclose(loss, ref, rtol=2e-3, atol=2e-3), (loss, ref)

    # Multi-tile grid (forced small tiles): ragged M exercises the norm-padded
    # ground truth; num_i, num_j > 1 exercise per-tile partial outputs and the
    # "parallel" subject axis.
    N2, M2 = 24, 300
    subj2 = jax.random.normal(k4, (N2, D), dtype=jnp.float32)
    obj2 = jax.random.normal(k5, (M2, D), dtype=jnp.float32)
    gt2 = jax.random.normal(k6, (N2, M2), dtype=jnp.float32)
    loss2 = knn_regression_loss(subj2, obj2, gt2, tile_n=8, tile_m=128)
    jax.block_until_ready(loss2)
    ref2 = knn_regression_loss_ref(subj2, obj2, gt2)
    assert jnp.allclose(loss2, ref2, rtol=2e-3, atol=2e-3), (loss2, ref2)

    # bf16 inputs: embeddings feed the MXU in bf16 (f32 accumulation), the
    # ground-truth stream is half the HBM bytes; elementwise math stays f32.
    loss3 = knn_regression_loss(subj2.astype(jnp.bfloat16),
                                obj2.astype(jnp.bfloat16),
                                gt2.astype(jnp.bfloat16),
                                tile_n=8, tile_m=128)
    jax.block_until_ready(loss3)
    ref3 = knn_regression_loss_ref(subj2.astype(jnp.bfloat16),
                                   obj2.astype(jnp.bfloat16),
                                   gt2.astype(jnp.bfloat16))
    assert jnp.allclose(loss3, ref3, rtol=2e-2, atol=2e-2), (loss3, ref3)

    print("KERNEL_OK")
</pallas_src>

<mosaic_0001>
module attributes {stable_mosaic.version = 11 : i64} {
  func.func @kernel(%arg0: i32, %arg1: i32, %arg2: memref<8x32xf32, #tpu.memory_space<vmem>>, %arg3: memref<128x32xf32, #tpu.memory_space<vmem>>, %arg4: memref<1x128xf32, #tpu.memory_space<vmem>>, %arg5: memref<8x128xf32, #tpu.memory_space<vmem>>, %arg6: memref<1x1x128xf32, #tpu.memory_space<vmem>>, %arg7: memref<8x1xf32, #tpu.memory_space<vmem>>, %arg8: memref<8x32xf32, #tpu.memory_space<vmem>>) attributes {dimension_semantics = [#tpu.dimension_semantics<parallel>, #tpu.dimension_semantics<arbitrary>], iteration_bounds = array<i64: 2, 1>, scalar_prefetch = 0 : i64, scratch_operands = 2 : i64, tpu.core_type = #tpu.core_type<tc>, window_params = [{transform_indices = @transform_0, window_bounds = array<i64: 8, 32>}, {transform_indices = @transform_1, window_bounds = array<i64: 128, 32>}, {transform_indices = @transform_2, window_bounds = array<i64: 1, 128>}, {transform_indices = @transform_3, window_bounds = array<i64: 8, 128>}, {transform_indices = @transform_4, window_bounds = array<i64: 1, 1, 128>}]} {
    %c0_i32 = arith.constant 0 : i32
    %0 = arith.cmpi eq, %arg1, %c0_i32 : i32
    %1 = arith.extui %0 : i1 to i32
    %c0_i32_0 = arith.constant 0 : i32
    %2 = arith.cmpi ne, %1, %c0_i32_0 : i32
    scf.if %2 {
      %c0_15 = arith.constant 0 : index
      %c0_16 = arith.constant 0 : index
      %23 = vector.load %arg2[%c0_15, %c0_16] : memref<8x32xf32, #tpu.memory_space<vmem>>, vector<8x32xf32>
      %24 = arith.mulf %23, %23 : vector<8x32xf32>
      %cst_17 = arith.constant dense<0.000000e+00> : vector<8xf32>
      %25 = vector.multi_reduction <add>, %24, %cst_17 [1] : vector<8x32xf32> to vector<8xf32>
      %26 = vector.shape_cast %25 : vector<8xf32> to vector<8x1xf32>
      %c0_18 = arith.constant 0 : index
      %c0_19 = arith.constant 0 : index
      %27 = vector.load %arg7[%c0_18, %c0_19] : memref<8x1xf32, #tpu.memory_space<vmem>>, vector<8x1xf32>
      tpu.vector_store %arg7[%c0_18, %c0_19], %26 {strides = array<i32>} : memref<8x1xf32, #tpu.memory_space<vmem>>, vector<8x1xf32>,
      %cst_20 = arith.constant -2.000000e+00 : f32
      %28 = vector.broadcast %cst_20 : f32 to vector<8x32xf32>
      %29 = arith.mulf %23, %28 : vector<8x32xf32>
      %c0_21 = arith.constant 0 : index
      %c0_22 = arith.constant 0 : index
      %30 = vector.load %arg8[%c0_21, %c0_22] : memref<8x32xf32, #tpu.memory_space<vmem>>, vector<8x32xf32>
      tpu.vector_store %arg8[%c0_21, %c0_22], %29 {strides = array<i32>} : memref<8x32xf32, #tpu.memory_space<vmem>>, vector<8x32xf32>,
    } else {
    }
    %c0 = arith.constant 0 : index
    %c0_1 = arith.constant 0 : index
    %3 = vector.load %arg8[%c0, %c0_1] : memref<8x32xf32, #tpu.memory_space<vmem>>, vector<8x32xf32>
    %c0_2 = arith.constant 0 : index
    %c0_3 = arith.constant 0 : index
    %4 = vector.load %arg3[%c0_2, %c0_3] : memref<128x32xf32, #tpu.memory_space<vmem>>, vector<128x32xf32>
    %cst = arith.constant dense<0.000000e+00> : vector<8x128xf32>
    %5 = tpu.matmul %3, %4, %cst {dimension_numbers = #tpu.dot_dimension_numbers<[1], [1], [0], [0], [0, 0, 1, 0], [], []>} : vector<8x32xf32>, vector<128x32xf32>, vector<8x128xf32> -> vector<8x128xf32>
    %c0_4 = arith.constant 0 : index
    %c0_5 = arith.constant 0 : index
    %6 = vector.load %arg7[%c0_4, %c0_5] : memref<8x1xf32, #tpu.memory_space<vmem>>, vector<8x1xf32>
    %c0_6 = arith.constant 0 : index
    %c0_7 = arith.constant 0 : index
    %7 = vector.load %arg4[%c0_6, %c0_7] : memref<1x128xf32, #tpu.memory_space<vmem>>, vector<1x128xf32>
    %8 = vector.broadcast %6 : vector<8x1xf32> to vector<8x128xf32>
    %9 = vector.broadcast %7 : vector<1x128xf32> to vector<8x128xf32>
    %10 = arith.addf %8, %9 : vector<8x128xf32>
    %11 = arith.addf %10, %5 : vector<8x128xf32>
    %cst_8 = arith.constant 0.000000e+00 : f32
    %12 = vector.broadcast %cst_8 : f32 to vector<8x128xf32>
    %13 = arith.maximumf %11, %12 : vector<8x128xf32>
    %14 = math.sqrt %13 : vector<8x128xf32>
    %c0_9 = arith.constant 0 : index
    %c0_10 = arith.constant 0 : index
    %15 = vector.load %arg5[%c0_9, %c0_10] : memref<8x128xf32, #tpu.memory_space<vmem>>, vector<8x128xf32>
    %16 = arith.subf %14, %15 : vector<8x128xf32>
    %17 = arith.mulf %16, %16 : vector<8x128xf32>
    %cst_11 = arith.constant dense<0.000000e+00> : vector<128xf32>
    %18 = vector.multi_reduction <add>, %17, %cst_11 [0] : vector<8x128xf32> to vector<128xf32>
    %19 = vector.shape_cast %18 : vector<128xf32> to vector<1x128xf32>
    %c0_12 = arith.constant 0 : index
    %c0_13 = arith.constant 0 : index
    %c0_14 = arith.constant 0 : index
    %20 = vector.load %arg6[%c0_12, %c0_13, %c0_14] : memref<1x1x128xf32, #tpu.memory_space<vmem>>, vector<1x1x128xf32>
    %21 = vector.shape_cast %20 : vector<1x1x128xf32> to vector<1x128xf32>
    %22 = vector.shape_cast %19 : vector<1x128xf32> to vector<1x1x128xf32>
    tpu.vector_store %arg6[%c0_12, %c0_13, %c0_14], %22 {strides = array<i32>} : memref<1x1x128xf32, #tpu.memory_space<vmem>>, vector<1x1x128xf32>,
    return
  }
  func.func @transform_0(%arg0: i32, %arg1: i32) -> (i32, i32) {
    %c0_i32 = arith.constant 0 : i32
    %c0_i32_0 = arith.constant 0 : i32
    return %arg0, %c0_i32 : i32, i32
  }
  func.func @transform_1(%arg0: i32, %arg1: i32) -> (i32, i32) {
    %c0_i32 = arith.constant 0 : i32
    %c0_i32_0 = arith.constant 0 : i32
    return %arg1, %c0_i32 : i32, i32
  }
  func.func @transform_2(%arg0: i32, %arg1: i32) -> (i32, i32) {
    %c0_i32 = arith.constant 0 : i32
    %c0_i32_0 = arith.constant 0 : i32
    return %c0_i32, %arg1 : i32, i32
  }
  func.func @transform_3(%arg0: i32, %arg1: i32) -> (i32, i32) {
    %c0_i32 = arith.constant 0 : i32
    return %arg0, %arg1 : i32, i32
  }
  func.func @transform_4(%arg0: i32, %arg1: i32) -> (i32, i32, i32) {
    %c0_i32 = arith.constant 0 : i32
    %c0_i32_0 = arith.constant 0 : i32
    return %arg0, %c0_i32, %arg1 : i32, i32, i32
  }
}

</mosaic_0001>

<llo_original>
// kernel: tpu_custom_call.1
$region0: #{tpu_custom_call.1}
  #allocation0 [shape = 'u32[]', space=smem, size = 0x4, offset = 0x4, fixed_abs, tag = 'smem constant byte address 0x4 - core index']
  #allocation1 [shape = 'u32[144,128]{1,0:T(1,128)}', space=vmem, size = 0x12000, scoped, tag = 'internal scratch']
  #allocation2 [shape = 'f32[8,1]{1,0:T(8,128)}', space=vmem, size = 0x1000, scoped, tag = 'scratch operand']
  #allocation3 [shape = 'f32[8,32]{1,0:T(8,128)}', space=vmem, size = 0x1000, scoped, tag = 'scratch operand']
  %s0 = inlined_call_operand.vmem [shape: f32[16,32], index: 0, kind: input, shape index: {}]
  %s1 = inlined_call_operand.vmem [shape: f32[128,32], index: 1, kind: input, shape index: {}]
  %s2 = inlined_call_operand.vmem [shape: f32[1,128], index: 2, kind: input, shape index: {}]
  %s3 = inlined_call_operand.vmem [shape: f32[16,128], index: 3, kind: input, shape index: {}]
  %s4 = inlined_call_operand.hbm [shape: f32[2,1,128], index: 4, kind: output, shape index: {}]
  %s5 = sld [smem:[#allocation0]]
  $region53: #{tpu_custom_call.1} parent=0
    _
  %s7 = ssub.s32 1, %s5
  %s8 = scalar_select 0, %s7, %s5
  $region1: #{tpu_custom_call.1} parent=0
    #allocation4 [shape = 'u8[1024]{0}', space=vmem, size = 0x400, scoped, tag = 'output window, operand 0']
    #allocation5 [shape = 's32[2]{0}', space=sflag, size = 0x8, scoped, tag = 'scoped memory for tpu_custom_call.1']
    %9 = vsyncpa [#allocation5], 0
    %s10 = scalar_lea.sflag [#allocation5], 1
    %11 = vsyncpa %s10, 0
    loop: start=0, step=1, limit=4
    $region2: #{tpu_custom_call.1} parent=1 // loop_pre_header
      _
    $region3: #{tpu_custom_call.1} parent=1 // loop_header
      %s13 = sphi 0, %s17
      %p14 = scmp.ge.s32.totalorder %s13, 4
      %s20 = sphi 0, %s32
      %s21 = sphi 0, %s28
      %s22 = sphi 0, %s20
      %s23 = sphi 0, %s21
      %s24 = sphi 0, %s22
      %s25 = sphi 0, %s23
      %s35 = sphi 0, %s37
      %s38 = sphi 0, %s35
      %s39 = sphi 0, %s38
      %s55 = sphi 0, %s39
      %s61 = sphi 0, %s63
      %s64 = sphi 0, %s61
      %s65 = sphi 0, %s64
      %s81 = sphi 0, %s65
      %s87 = sphi 0, %s89
      %s90 = sphi 0, %s87
      %s91 = sphi 0, %s90
      %s107 = sphi 0, %s91
      %s115 = sphi 0, %s117
      %s118 = sphi 0, %s115
      %s119 = sphi 0, %s118
      %s135 = sphi 0, %s119
      %s143 = sphi 0, %s145
      %s146 = sphi 0, %s143
      %s147 = sphi 0, %s146
      %s163 = sphi 0, %s147
    $region4: #{tpu_custom_call.1} parent=1 // loop_header_branch
      %16 = sbr.rel (%p14) target = $region8
    $region5: #{tpu_custom_call.1} parent=1 // loop_body
      %s18 = ssub.s32 %s13, 1
      %s19 = ssub.s32 %s13, 2
      %s26 = sadd.s32 1, %s21
      %p27 = scmp.ge.s32.totalorder %s26, 1
      %s28 = scalar_select %p27, 0, %s26
      %s29 = sadd.s32 1, %s20
      %s30 = scalar_select %p27, %s29, %s20
      %p31 = scmp.ge.s32.totalorder %s30, 2
      %s32 = scalar_select %p31, 0, %s30
      %s33 = ssub.s32 %s20, %s32
      %p34 = scmp.eq.s32.totalorder %s33, 0
      %s36 = sadd.s32 %s35, 1
      %s37 = scalar_select %p34, %s35, %s36
      %p40 = pneg %p34
      %p41 = scmp.eq.s32.totalorder %s13, 1
      %p42 = por %p40, %p41
      %p43 = scmp.ne.s32.totalorder %s35, %s38
      %p44 = scmp.eq.s32.totalorder %s13, 0
      %p45 = por %p43, %p44
      %p46 = scmp.ne.s32.totalorder %s35, %s38
      %p47 = scmp.eq.s32.totalorder %s18, 1
      %p48 = por %p46, %p47
      %p49 = scmp.ne.s32.totalorder %s38, %s39
      %p50 = scmp.eq.s32.totalorder %s18, 0
      %p51 = por %p49, %p50
      %p52 = scmp.ne.s32.totalorder %s38, %s39
      %p53 = scmp.eq.s32.totalorder %s19, 1
      %p54 = por %p52, %p53
      %p56 = scmp.ne.s32.totalorder %s39, %s55
      %p57 = scmp.eq.s32.totalorder %s19, 0
      %p58 = por %p56, %p57
      %s59 = ssub.s32 %s21, %s28
      %p60 = scmp.eq.s32.totalorder %s59, 0
      %s62 = sadd.s32 %s61, 1
      %s63 = scalar_select %p60, %s61, %s62
      %p66 = pneg %p60
      %p67 = scmp.eq.s32.totalorder %s13, 1
      %p68 = por %p66, %p67
      %p69 = scmp.ne.s32.totalorder %s61, %s64
      %p70 = scmp.eq.s32.totalorder %s13, 0
      %p71 = por %p69, %p70
      %p72 = scmp.ne.s32.totalorder %s61, %s64
      %p73 = scmp.eq.s32.totalorder %s18, 1
      %p74 = por %p72, %p73
      %p75 = scmp.ne.s32.totalorder %s64, %s65
      %p76 = scmp.eq.s32.totalorder %s18, 0
      %p77 = por %p75, %p76
      %p78 = scmp.ne.s32.totalorder %s64, %s65
      %p79 = scmp.eq.s32.totalorder %s19, 1
      %p80 = por %p78, %p79
      %p82 = scmp.ne.s32.totalorder %s65, %s81
      %p83 = scmp.eq.s32.totalorder %s19, 0
      %p84 = por %p82, %p83
      %s85 = ssub.s32 %s21, %s28
      %p86 = scmp.eq.s32.totalorder %s85, 0
      %s88 = sadd.s32 %s87, 1
      %s89 = scalar_select %p86, %s87, %s88
      %p92 = pneg %p86
      %p93 = scmp.eq.s32.totalorder %s13, 1
      %p94 = por %p92, %p93
      %p95 = scmp.ne.s32.totalorder %s87, %s90
      %p96 = scmp.eq.s32.totalorder %s13, 0
      %p97 = por %p95, %p96
      %p98 = scmp.ne.s32.totalorder %s87, %s90
      %p99 = scmp.eq.s32.totalorder %s18, 1
      %p100 = por %p98, %p99
      %p101 = scmp.ne.s32.totalorder %s90, %s91
      %p102 = scmp.eq.s32.totalorder %s18, 0
      %p103 = por %p101, %p102
      %p104 = scmp.ne.s32.totalorder %s90, %s91
      %p105 = scmp.eq.s32.totalorder %s19, 1
      %p106 = por %p104, %p105
      %p108 = scmp.ne.s32.totalorder %s91, %s107
      %p109 = scmp.eq.s32.totalorder %s19, 0
      %p110 = por %p108, %p109
      %s111 = ssub.s32 %s20, %s32
      %s112 = ssub.s32 %s21, %s28
      %s113 = sor.u32 %s111, %s112
      %p114 = scmp.eq.s32.totalorder %s113, 0
      %s116 = sadd.s32 %s115, 1
      %s117 = scalar_select %p114, %s115, %s116
      %p120 = pneg %p114
      %p121 = scmp.eq.s32.totalorder %s13, 1
      %p122 = por %p120, %p121
      %p123 = scmp.ne.s32.totalorder %s115, %s118
      %p124 = scmp.eq.s32.totalorder %s13, 0
      %p125 = por %p123, %p124
      %p126 = scmp.ne.s32.totalorder %s115, %s118
      %p127 = scmp.eq.s32.totalorder %s18, 1
      %p128 = por %p126, %p127
      %p129 = scmp.ne.s32.totalorder %s118, %s119
      %p130 = scmp.eq.s32.totalorder %s18, 0
      %p131 = por %p129, %p130
      %p132 = scmp.ne.s32.totalorder %s118, %s119
      %p133 = scmp.eq.s32.totalorder %s19, 1
      %p134 = por %p132, %p133
      %p136 = scmp.ne.s32.totalorder %s119, %s135
      %p137 = scmp.eq.s32.totalorder %s19, 0
      %p138 = por %p136, %p137
      %s139 = ssub.s32 %s20, %s32
      %s140 = ssub.s32 %s21, %s28
      %s141 = sor.u32 %s139, %s140
      %p142 = scmp.eq.s32.totalorder %s141, 0
      %s144 = sadd.s32 %s143, 1
      %s145 = scalar_select %p142, %s143, %s144
      %p148 = pneg %p142
      %p149 = scmp.eq.s32.totalorder %s13, 1
      %p150 = por %p148, %p149
      %p151 = scmp.ne.s32.totalorder %s143, %s146
      %p152 = scmp.eq.s32.totalorder %s13, 0
      %p153 = por %p151, %p152
      %p154 = scmp.ne.s32.totalorder %s143, %s146
      %p155 = scmp.eq.s32.totalorder %s18, 1
      %p156 = por %p154, %p155
      %p157 = scmp.ne.s32.totalorder %s146, %s147
      %p158 = scmp.eq.s32.totalorder %s18, 0
      %p159 = por %p157, %p158
      %p160 = scmp.ne.s32.totalorder %s146, %s147
      %p161 = scmp.eq.s32.totalorder %s19, 1
      %p162 = por %p160, %p161
      %p164 = scmp.ne.s32.totalorder %s147, %s163
      %p165 = scmp.eq.s32.totalorder %s19, 0
      %p166 = por %p164, %p165
      %p167 = scmp.le.s32.totalorder 1, %s13
      %p168 = scmp.lt.s32.totalorder %s13, 3
      %p169 = pnand %p167, %p168
      %p170 = pneg %p169
      // Predicated region
      $region9: #{tpu_custom_call.1} parent=5 // pred_check
        _
      $region10: #{tpu_custom_call.1} parent=5 // pred_check_branch
        %172 = sbr.rel (%p169) target = $region12
      $region11: #{tpu_custom_call.1} parent=5 // pred_region
        %s173 = ssub.s32 %s13, 1
        // Predicated region
        $region13: #{tpu_custom_call.1} parent=11 // pred_check
          %p174 = pneg %p77
        $region14: #{tpu_custom_call.1} parent=11 // pred_check_branch
          %176 = sbr.rel (%p174) target = $region16
        $region15: #{tpu_custom_call.1} parent=11 // pred_region
          %s177 = smul.u32 16, %s23
          %p178 = scmp.lt.s32.totalorder %s177, 15
          %s179 = scalar_select %p178, %s177, 15
          %s180 = smul.addr %s179, 8
          %s181 = scalar_lea.vmem %s1, %s180
          %s182 = smul.u32 16, %s23
        $region16: #{tpu_custom_call.1} parent=11 // pred_fallthru
          _
        // Predicated region
        $region17: #{tpu_custom_call.1} parent=11 // pred_check
          %p183 = pneg %p103
        $region18: #{tpu_custom_call.1} parent=11 // pred_check_branch
          %185 = sbr.rel (%p183) target = $region20
        $region19: #{tpu_custom_call.1} parent=11 // pred_region
          %p186 = scmp.lt.s32.totalorder %s23, 0
          %s187 = scalar_select %p186, %s23, 0
          %s188 = scalar_lea.vmem %s2, %s187
        $region20: #{tpu_custom_call.1} parent=11 // pred_fallthru
          _
      $region12: #{tpu_custom_call.1} parent=5 // pred_fallthru
        _
      %p189 = scmp.lt.s32.totalorder %s13, 2
      // Predicated region
      $region21: #{tpu_custom_call.1} parent=5 // pred_check
        %p190 = pneg %p189
      $region22: #{tpu_custom_call.1} parent=5 // pred_check_branch
        %192 = sbr.rel (%p190) target = $region24
      $region23: #{tpu_custom_call.1} parent=5 // pred_region
        // Predicated region
        $region25: #{tpu_custom_call.1} parent=23 // pred_check
          %p193 = pneg %p45
        $region26: #{tpu_custom_call.1} parent=23 // pred_check_branch
          %195 = sbr.rel (%p193) target = $region28
        $region27: #{tpu_custom_call.1} parent=23 // pred_region
          %p196 = scmp.lt.s32.totalorder %s20, 1
          %s197 = scalar_select %p196, %s20, 1
          %s198 = smul.addr %s197, 8
          %s199 = scalar_lea.vmem %s0, %s198
        $region28: #{tpu_custom_call.1} parent=23 // pred_fallthru
          _
        // Predicated region
        $region29: #{tpu_custom_call.1} parent=23 // pred_check
          %p200 = pneg %p125
        $region30: #{tpu_custom_call.1} parent=23 // pred_check_branch
          %202 = sbr.rel (%p200) target = $region32
        $region31: #{tpu_custom_call.1} parent=23 // pred_region
          %p203 = scmp.lt.s32.totalorder %s20, 1
          %s204 = scalar_select %p203, %s20, 1
          %p205 = scmp.lt.s32.totalorder %s21, 0
          %s206 = scalar_select %p205, %s21, 0
          %s207 = sadd.s32 %s206, %s204
          %s208 = smul.addr %s207, 8
          %s209 = scalar_lea.vmem %s3, %s208
        $region32: #{tpu_custom_call.1} parent=23 // pred_fallthru
          _
      $region24: #{tpu_custom_call.1} parent=5 // pred_fallthru
        _
      %p210 = scmp.le.s32.totalorder 1, %s13
      %p211 = scmp.lt.s32.totalorder %s13, 3
      %p212 = pnand %p210, %p211
      %p213 = pneg %p212
      // Predicated region
      $region33: #{tpu_custom_call.1} parent=5 // pred_check
        _
      $region34: #{tpu_custom_call.1} parent=5 // pred_check_branch
        %215 = sbr.rel (%p212) target = $region36
      $region35: #{tpu_custom_call.1} parent=5 // pred_region
        %s216 = ssub.s32 %s13, 1
        %p217 = scmp.lt.s32.totalorder %s22, 1
        %s218 = scalar_select %p217, %s22, 1
        %s219 = smul.addr %s218, 8
        %s220 = scalar_lea.vmem %s0, %s219
        %p221 = pneg %p51
        %p222 = pneg %p48
        %s223 = smul.u32 16, %s23
        %p224 = scmp.lt.s32.totalorder %s223, 15
        %s225 = scalar_select %p224, %s223, 15
        %s226 = smul.addr %s225, 8
        %s227 = scalar_lea.vmem %s1, %s226
        %p228 = pneg %p77
        %p229 = pneg %p74
        %p230 = scmp.lt.s32.totalorder %s23, 0
        %s231 = scalar_select %p230, %s23, 0
        %s232 = scalar_lea.vmem %s2, %s231
        %p233 = pneg %p103
        %p234 = pneg %p100
        %p235 = scmp.lt.s32.totalorder %s22, 1
        %s236 = scalar_select %p235, %s22, 1
        %p237 = scmp.lt.s32.totalorder %s23, 0
        %s238 = scalar_select %p237, %s23, 0
        %s239 = sadd.s32 %s238, %s236
        %s240 = smul.addr %s239, 8
        %s241 = scalar_lea.vmem %s3, %s240
        %p242 = pneg %p131
        %p243 = pneg %p128
        %p244 = pneg %p159
        %p245 = pneg %p156
        %s246 = sand.u32 %s146, 1
        %s247 = scalar_lea.sflag [#allocation5], %s246
        %s248 = sand.u32 %s146, 1
        %s249 = scalar_lea.vmem [#allocation4], %s248
        %p250 = scmp.lt.s32.totalorder %s22, 1
        %s251 = scalar_select %p250, %s22, 1
        %s252 = smul.addr %s251, 8
        %s253 = scalar_lea.vmem %s0, %s252
        %s254 = smul.u32 16, %s23
        %p255 = scmp.lt.s32.totalorder %s254, 15
        %s256 = scalar_select %p255, %s254, 15
        %s257 = smul.addr %s256, 8
        %s258 = scalar_lea.vmem %s1, %s257
        %s259 = smul.u32 16, %s23
        %p260 = scmp.lt.s32.totalorder %s23, 0
        %s261 = scalar_select %p260, %s23, 0
        %s262 = scalar_lea.vmem %s2, %s261
        %p263 = scmp.lt.s32.totalorder %s22, 1
        %s264 = scalar_select %p263, %s22, 1
        %p265 = scmp.lt.s32.totalorder %s23, 0
        %s266 = scalar_select %p265, %s23, 0
        %s267 = sadd.s32 %s266, %s264
        %s268 = smul.addr %s267, 8
        %s269 = scalar_lea.vmem %s3, %s268
        %p270 = scmp.eq.s32.totalorder %s23, 0
        // Predicated region
        $region37: #{tpu_custom_call.1} parent=35 // pred_check
          %p271 = pneg %p270
        $region38: #{tpu_custom_call.1} parent=35 // pred_check_branch
          %273 = sbr.rel (%p271) target = $region40
        $region39: #{tpu_custom_call.1} parent=35 // pred_region
          %v274 = vld [vmem:[%s253] sm:$0xff]
          %v275 = vmul.f32 %v274, %v274
          %vm276 = vcmask 261120
          %v277 = vsel %vm276, %v275, 0.0
          %278 = vadd.xlane.f32.xlu0 %v277
          %v279 = vpop.xlane.xlu0 %278
          %vm280 = vcmask 7168
          %281 = vst.msk [vmem:[#allocation2] sm:$0xff] %vm280, %v279
          %v282 = vmul.f32 %v274, -2.0
          %283 = vst.msk [vmem:[#allocation3] sm:$0xff] %vm276, %v282
        $region40: #{tpu_custom_call.1} parent=35 // pred_fallthru
          _
        %v284 = vld [vmem:[#allocation3] sm:$0xff]
        %v285 = vld [vmem:[%s258] sm:$0xff]
        %v286 = vld [vmem:[%s258 + $0x8] sm:$0xff]
        %v287 = vld [vmem:[%s258 + $0x10] sm:$0xff]
        %v288 = vld [vmem:[%s258 + $0x18] sm:$0xff]
        %v289 = vld [vmem:[%s258 + $0x20] sm:$0xff]
        %v290 = vld [vmem:[%s258 + $0x28] sm:$0xff]
        %v291 = vld [vmem:[%s258 + $0x30] sm:$0xff]
        %v292 = vld [vmem:[%s258 + $0x38] sm:$0xff]
        %v293 = vld [vmem:[%s258 + $0x40] sm:$0xff]
        %v294 = vld [vmem:[%s258 + $0x48] sm:$0xff]
        %v295 = vld [vmem:[%s258 + $0x50] sm:$0xff]
        %v296 = vld [vmem:[%s258 + $0x58] sm:$0xff]
        %v297 = vld [vmem:[%s258 + $0x60] sm:$0xff]
        %v298 = vld [vmem:[%s258 + $0x68] sm:$0xff]
        %v299 = vld [vmem:[%s258 + $0x70] sm:$0xff]
        %v300 = vld [vmem:[%s258 + $0x78] sm:$0xff]
        %vm301 = vcmask 261120
        %v303 = vsel %vm301, %v284, 0
        %v306 = vsel %vm301, %v285, 0
        %v309 = vsel %vm301, %v286, 0
        %v312 = vsel %vm301, %v287, 0
        %v315 = vsel %vm301, %v288, 0
        %v318 = vsel %vm301, %v289, 0
        %v321 = vsel %vm301, %v290, 0
        %v324 = vsel %vm301, %v291, 0
        %v327 = vsel %vm301, %v292, 0
        %v330 = vsel %vm301, %v293, 0
        %v333 = vsel %vm301, %v294, 0
        %v336 = vsel %vm301, %v295, 0
        %v339 = vsel %vm301, %v296, 0
        %v342 = vsel %vm301, %v297, 0
        %v345 = vsel %vm301, %v298, 0
        %v348 = vsel %vm301, %v299, 0
        %v351 = vsel %vm301, %v300, 0
        %353 = vmatprep.subr.mxu0 0.0
        %354 = vmatpush1.xpose.msra.mxu0 %v306
        %355 = vmatprep.subr.mxu0 0.0
        %356 = vmatpush1.xpose.msra.mxu0 %v309
        %357 = vmatprep.subr.mxu0 0.0
        %358 = vmatpush1.xpose.msra.mxu0 %v312
        %359 = vmatprep.subr.mxu0 0.0
        %360 = vmatpush1.xpose.msra.mxu0 %v315
        %361 = vmatprep.subr.mxu0 0.0
        %362 = vmatpush1.xpose.msra.mxu0 %v318
        %363 = vmatprep.subr.mxu0 0.0
        %364 = vmatpush1.xpose.msra.mxu0 %v321
        %365 = vmatprep.subr.mxu0 0.0
        %366 = vmatpush1.xpose.msra.mxu0 %v324
        %367 = vmatprep.subr.mxu0 0.0
        %368 = vmatpush1.xpose.msra.mxu0 %v327
        %369 = vmatprep.subr.mxu0 0.0
        %370 = vmatpush1.xpose.msra.mxu0 %v330
        %371 = vmatprep.subr.mxu0 0.0
        %372 = vmatpush1.xpose.msra.mxu0 %v333
        %373 = vmatprep.subr.mxu0 0.0
        %374 = vmatpush1.xpose.msra.mxu0 %v336
        %375 = vmatprep.subr.mxu0 0.0
        %376 = vmatpush1.xpose.msra.mxu0 %v339
        %377 = vmatprep.subr.mxu0 0.0
        %378 = vmatpush1.xpose.msra.mxu0 %v342
        %379 = vmatprep.subr.mxu0 0.0
        %380 = vmatpush1.xpose.msra.mxu0 %v345
        %381 = vmatprep.subr.mxu0 0.0
        %382 = vmatpush1.xpose.msra.mxu0 %v348
        %383 = vmatprep.subr.mxu0 0.0
        %384 = vmatpush1.xpose.msra.mxu0 %v351
        %385 = vmatprep.subr.mxu0 0.0
        %386 = vmatpush1.xpose.msra.mxu0 0.0
        %387 = vmatprep.subr.mxu0 0.0
        %388 = vmatpush1.xpose.msra.mxu0 0.0
        %389 = vmatprep.subr.mxu0 0.0
        %390 = vmatpush1.xpose.msra.mxu0 0.0
        %391 = vmatprep.subr.mxu0 0.0
        %392 = vmatpush1.xpose.msra.mxu0 0.0
        %393 = vmatprep.subr.mxu0 0.0
        %394 = vmatpush1.xpose.msra.mxu0 0.0
        %395 = vmatprep.subr.mxu0 0.0
        %396 = vmatpush1.xpose.msra.mxu0 0.0
        %397 = vmatprep.subr.mxu0 0.0
        %398 = vmatpush1.xpose.msra.mxu0 0.0
        %399 = vmatprep.subr.mxu0 0.0
        %400 = vmatpush1.xpose.msra.mxu0 0.0
        %401 = vmatprep.subr.mxu0 0.0
        %402 = vmatpush1.xpose.msra.mxu0 0.0
        %403 = vmatprep.subr.mxu0 0.0
        %404 = vmatpush1.xpose.msra.mxu0 0.0
        %405 = vmatprep.subr.mxu0 0.0
        %406 = vmatpush1.xpose.msra.mxu0 0.0
        %407 = vmatprep.subr.mxu0 0.0
        %408 = vmatpush1.xpose.msra.mxu0 0.0
        %409 = vmatprep.subr.mxu0 0.0
        %410 = vmatpush1.xpose.msra.mxu0 0.0
        %411 = vmatprep.subr.mxu0 0.0
        %412 = vmatpush1.xpose.msra.mxu0 0.0
        %413 = vmatprep.subr.mxu0 0.0
        %414 = vmatpush1.xpose.msra.mxu0 0.0
        %415 = vmatprep.subr.mxu0 0.0
        %416 = vmatpush1.xpose.msra.mxu0 0.0
        %417 = vmatprep.mubr.f32.mxu0 0.0
        %418 = vmatmul.mubr.f32.gmra.mrb[0].mxu0 %v303
        %v419 = vpop.f32.mrb[0].mxu0
        %v420 = vadd.f32 0.0, %v419
        %v421 = vpop.f32.mrb[0].mxu0
        %422 = vdwg.mxu0
        %v423 = vld [vmem:[#allocation2] sm:$0xff]
        %v424 = vld [vmem:[%s262] sm:$0x1]
        %426 = vset.pattern.permute.xlu0 0
        %427 = vperm.xlu0 %426, %v423
        %v428 = vpop.permute.xlu0 %427
        %v431 = vlaneseq
        %v432 = vshrl.u32 %v431, 7
        %v433 = vsub.s32 0, %v432
        %v434 = vrot.slane %v424, %v433
        %v436 = vadd.f32 %v428, %v434
        %v437 = vadd.f32 %v436, %v420
        %v438 = vmax.f32 %v437, 0.0
        %v439 = vrsqrt.pop %v438
        %v440 = vmul.f32 %v438, %v439
        %vm441 = vcmp.eq.f32.partialorder %v438, inf
        %v442 = vsel %vm441, %v438, %v440
        %vm443 = vcmp.eq.f32.partialorder %v438, 0.0
        %v444 = vand.u32 %v438, 2147483648
        %v445 = vsel %vm443, %v444, %v442
        %v446 = vld [vmem:[%s269] sm:$0xff]
        %v447 = vsub.f32 %v445, %v446
        %v448 = vmul.f32 %v447, %v447
        %v449 = vrot.slane %v448, 4
        %v450 = vadd.f32 %v448, %v449
        %v451 = vrot.slane %v450, 2
        %v452 = vadd.f32 %v450, %v451
        %v453 = vrot.slane %v452, 1
        %v454 = vadd.f32 %v452, %v453
        %455 = vst [vmem:[%s249] sm:$0x1] %v454
        %s456 = sand.u32 %s146, 1
        %s457 = scalar_lea.sflag [#allocation5], %s456
        %s458 = sand.u32 %s146, 1
        %s459 = scalar_lea.vmem [#allocation4], %s458
        // Predicated region
        $region41: #{tpu_custom_call.1} parent=35 // pred_check
          %p460 = pneg %p156
        $region42: #{tpu_custom_call.1} parent=35 // pred_check_branch
          %462 = sbr.rel (%p460) target = $region44
        $region43: #{tpu_custom_call.1} parent=35 // pred_region
          %s464 = ssub.s32 16, 16
          %465 = vsyncadd %s457, %s464
          %s466 = sadd.s32 %s23, %s22
          %s467 = smul.addr %s466, 16
          %s468 = scalar_lea.hbm %s4, %s467
          %s470 = sshll.u32 %s459, 4
          %s471 = int_to_ptr.vmem [resolvable:$true] %s470
          %473 = dma.vmem_to_hbm [thread:$0]  %s471, 16, %s468, %s457
        $region44: #{tpu_custom_call.1} parent=35 // pred_fallthru
          _
      $region36: #{tpu_custom_call.1} parent=5 // pred_fallthru
        _
      %p474 = scmp.le.s32.totalorder 2, %s13
      // Predicated region
      $region45: #{tpu_custom_call.1} parent=5 // pred_check
        %p475 = pneg %p474
      $region46: #{tpu_custom_call.1} parent=5 // pred_check_branch
        %477 = sbr.rel (%p475) target = $region48
      $region47: #{tpu_custom_call.1} parent=5 // pred_region
        %s478 = ssub.s32 %s13, 2
        // Predicated region
        $region49: #{tpu_custom_call.1} parent=47 // pred_check
          %p479 = pneg %p162
        $region50: #{tpu_custom_call.1} parent=47 // pred_check_branch
          %481 = sbr.rel (%p479) target = $region52
        $region51: #{tpu_custom_call.1} parent=47 // pred_region
          %s482 = sand.u32 %s147, 1
          %s483 = scalar_lea.sflag [#allocation5], %s482
          %s484 = sand.u32 %s147, 1
          %s485 = scalar_lea.vmem [#allocation4], %s484
          %486 = dma.done %s483, 16
        $region52: #{tpu_custom_call.1} parent=47 // pred_fallthru
          _
      $region48: #{tpu_custom_call.1} parent=5 // pred_fallthru
        _
    $region6: #{tpu_custom_call.1} parent=1 // loop_footer
      %s17 = sadd.s32 1, %s13
    $region7: #{tpu_custom_call.1} parent=1 // loop_footer_branch
      %12 = sbr.rel target = $region3
    $region8: #{tpu_custom_call.1} parent=1 // loop_exit
      _
    %487 = vsyncpa [#allocation5], 1
    %s488 = scalar_lea.sflag [#allocation5], 1
    %489 = vsyncpa %s488, 1

</llo_original>
